<compile_context>
chip_gen: v7x
topology: tpu7x:2x2x1
jax: 0.10.0
libtpu: 0.0.40
codegen_flags: <defaults>
</compile_context>

<pallas_src>
import re

import jax
import jax.numpy as jnp
from jax.experimental import pallas as pl
from jax.experimental.pallas import tpu as pltpu


# ---------------------------------------------------------------------------
# Small helpers: chip detection, tiling policy, VMEM budget
# ---------------------------------------------------------------------------
def _round_up(n, m):
    return ((n + m - 1) // m) * m


def _cdiv(a, b):
    return (a + b - 1) // b


def _chip_generation():
    try:
        kind = jax.devices()[0].device_kind  # e.g. "TPU v5 lite", "TPU v6e", "TPU7x"
        m = re.search(r"(\d+)", kind)
        if m:
            return int(m.group(1))
    except Exception:
        pass
    return 6


def _vmem_capacity_bytes():
    try:
        info = pltpu.get_tpu_info()
        for attr in ("vmem_capacity_bytes", "vmem_size_bytes", "vmem_bytes"):
            cap = getattr(info, attr, None)
            if cap:
                return int(cap)
    except Exception:
        pass
    return (64 << 20) if _chip_generation() >= 7 else (128 << 20)


def _choose_batch_tile(B, gen):
    # v5e/v6e: large tiles (128 MiB VMEM, amortize grid-step overhead).
    # v7x:     cap at 256 and force >=2 tiles so "parallel" shards over both TCs.
    tb_cap = 256 if gen >= 7 else 512
    min_tiles = 2 if (gen >= 7 and B > 8) else 1
    n_tiles = max(min_tiles, _cdiv(B, tb_cap))
    TB = _round_up(_cdiv(B, n_tiles), 8)
    Bp = _round_up(B, TB)
    return TB, Bp


def _vmem_limit_bytes(TB, INp, Hp, fused, extra_bytes=0):
    # Resident weights/biases (the pipeline still allocates 2 buffers).
    wbytes = INp * Hp * 2                                        # W_i (bf16)
    if fused:
        wbytes += (2 * Hp) * (4 * Hp) * 2                        # W_g (bf16)
    else:
        wbytes += 2 * (Hp * (3 * Hp) * 2)                        # W_ga + W_gh (bf16)
    wbytes += (3 * Hp + 4 * Hp) * 4                              # b_i/tresh/decay + b_g (f32)
    # Streamed per-batch-tile blocks: x in, h/pot in, h/pot out.
    tbytes = TB * (INp * 2 + 4 * Hp * 4)
    # Live in-kernel intermediates: potential/activated + gate pre-activations
    # (TB x 4Hp f32 fused, 2 x TB x 3Hp f32 split).
    ibytes = TB * Hp * 4 * (2 + (4 if fused else 6))
    need = 2 * (wbytes + tbytes) + ibytes + extra_bytes          # x2: double buffering
    cap = int(0.82 * _vmem_capacity_bytes())                     # ~105 MiB v5e/v6e, ~52 MiB v7x
    return int(min(cap, max(need + (8 << 20), 32 << 20)))


# ---------------------------------------------------------------------------
# Kernel building blocks (shared by the single-step and sequence kernels)
# ---------------------------------------------------------------------------
def _pglu(x_bf16, pot, wi, bi, tresh, decay):
    processed = jnp.dot(x_bf16, wi, preferred_element_type=jnp.float32) + bi
    potential = pot + processed
    over = potential > tresh
    activated = jnp.where(over, potential, 0.0)
    pot_new = jnp.where(over, 0.0, potential) * decay
    return activated, pot_new


def _gru_gates_fused(activated, h, wg, bg, Hp):
    # One MXU call over cat([activated, h]) with the (2Hp, 4Hp) gate slab:
    #   cols [0:Hp]=i_r+h_r, [Hp:2Hp]=i_z+h_z, [2Hp:3Hp]=i_n, [3Hp:4Hp]=h_n.
    cat = jnp.concatenate(
        [activated.astype(jnp.bfloat16), h.astype(jnp.bfloat16)], axis=1)
    g = jnp.dot(cat, wg, preferred_element_type=jnp.float32) + bg
    r = jax.nn.sigmoid(g[:, 0:Hp])
    z = jax.nn.sigmoid(g[:, Hp:2 * Hp])
    n = jnp.tanh(g[:, 2 * Hp:3 * Hp] + r * g[:, 3 * Hp:4 * Hp])
    return (1.0 - z) * n + z * h


def _gru_gates_split(activated, h, wga, wgh, bg, Hp):
    # Two accumulating dots, no concat buffer, no zero blocks (v5e / Hp>=256 / v7x).
    gi = jnp.dot(activated.astype(jnp.bfloat16), wga,
                 preferred_element_type=jnp.float32)
    gh = jnp.dot(h.astype(jnp.bfloat16), wgh,
                 preferred_element_type=jnp.float32)
    r = jax.nn.sigmoid(gi[:, 0:Hp] + gh[:, 0:Hp] + bg[:, 0:Hp])
    z = jax.nn.sigmoid(gi[:, Hp:2 * Hp] + gh[:, Hp:2 * Hp] + bg[:, Hp:2 * Hp])
    n = jnp.tanh(gi[:, 2 * Hp:3 * Hp] + bg[:, 2 * Hp:3 * Hp]
                 + r * (gh[:, 2 * Hp:3 * Hp] + bg[:, 3 * Hp:4 * Hp]))
    return (1.0 - z) * n + z * h


# ---------------------------------------------------------------------------
# Single-step kernel (one batch-tile grid)
# ---------------------------------------------------------------------------
def _make_step_kernel(fused):
    if fused:
        def kernel(x_ref, h_ref, pot_ref,
                   wi_ref, bi_ref, tresh_ref, decay_ref, wg_ref, bg_ref,
                   h_new_ref, pot_new_ref):
            Hp = h_ref.shape[1]
            activated, pot_new = _pglu(x_ref[...], pot_ref[...], wi_ref[...],
                                       bi_ref[...], tresh_ref[...], decay_ref[...])
            pot_new_ref[...] = pot_new
            h_new_ref[...] = _gru_gates_fused(activated, h_ref[...],
                                              wg_ref[...], bg_ref[...], Hp)
        return kernel

    def kernel(x_ref, h_ref, pot_ref,
               wi_ref, bi_ref, tresh_ref, decay_ref, wga_ref, wgh_ref, bg_ref,
               h_new_ref, pot_new_ref):
        Hp = h_ref.shape[1]
        activated, pot_new = _pglu(x_ref[...], pot_ref[...], wi_ref[...],
                                   bi_ref[...], tresh_ref[...], decay_ref[...])
        pot_new_ref[...] = pot_new
        h_new_ref[...] = _gru_gates_split(activated, h_ref[...],
                                          wga_ref[...], wgh_ref[...], bg_ref[...], Hp)
    return kernel


# ---------------------------------------------------------------------------
# Sequence kernel: grid=(batch_tiles, T), state carried in VMEM scratch
# ---------------------------------------------------------------------------
def _make_seq_kernel(fused):
    if fused:
        def kernel(x_ref, h0_ref, pot0_ref,
                   wi_ref, bi_ref, tresh_ref, decay_ref, wg_ref, bg_ref,
                   h_seq_ref, pot_out_ref, h_sc, pot_sc):
            Hp = h_sc.shape[1]
            t = pl.program_id(1)

            @pl.when(t == 0)
            def _init():
                h_sc[...] = h0_ref[...]
                pot_sc[...] = pot0_ref[...]

            activated, pot_new = _pglu(x_ref[0], pot_sc[...], wi_ref[...],
                                       bi_ref[...], tresh_ref[...], decay_ref[...])
            pot_sc[...] = pot_new
            h_new = _gru_gates_fused(activated, h_sc[...], wg_ref[...], bg_ref[...], Hp)
            h_sc[...] = h_new
            h_seq_ref[0, :, :] = h_new

            @pl.when(t == pl.num_programs(1) - 1)
            def _fin():
                pot_out_ref[...] = pot_sc[...]
        return kernel

    def kernel(x_ref, h0_ref, pot0_ref,
               wi_ref, bi_ref, tresh_ref, decay_ref, wga_ref, wgh_ref, bg_ref,
               h_seq_ref, pot_out_ref, h_sc, pot_sc):
        Hp = h_sc.shape[1]
        t = pl.program_id(1)

        @pl.when(t == 0)
        def _init():
            h_sc[...] = h0_ref[...]
            pot_sc[...] = pot0_ref[...]

        activated, pot_new = _pglu(x_ref[0], pot_sc[...], wi_ref[...],
                                   bi_ref[...], tresh_ref[...], decay_ref[...])
        pot_sc[...] = pot_new
        h_new = _gru_gates_split(activated, h_sc[...], wga_ref[...], wgh_ref[...],
                                 bg_ref[...], Hp)
        h_sc[...] = h_new
        h_seq_ref[0, :, :] = h_new

        @pl.when(t == pl.num_programs(1) - 1)
        def _fin():
            pot_out_ref[...] = pot_sc[...]
    return kernel


# ---------------------------------------------------------------------------
# Parameter preparation: pad to 128-aligned gates, build gate slabs, cast bf16.
# Done once, outside the per-step / per-sequence calls.
# ---------------------------------------------------------------------------
def prepare_params(params, input_size, hidden_size, fused=None):
    IN, H = input_size, hidden_size
    INp = _round_up(IN, 128)
    Hp = _round_up(H, 128)
    if fused is None:
        # Fused K=2Hp slab only pays off on a 256-deep MXU (v6e/v7x) at Hp==128.
        fused = (Hp == 128 and _chip_generation() >= 6)

    wi = jnp.zeros((INp, Hp), jnp.float32).at[:IN, :H].set(params["W_i"])
    bi = jnp.zeros((1, Hp), jnp.float32).at[:, :H].set(params["b_i"])
    tresh = jnp.zeros((1, Hp), jnp.float32).at[:, :H].set(params["tresh"])
    decay = jnp.zeros((1, Hp), jnp.float32).at[:, :H].set(params["decay"])

    w_ih, w_hh = params["W_ih"], params["W_hh"]   # (H, 3H), gate order [r, z, n]
    b_ih, b_hh = params["b_ih"], params["b_hh"]   # (1, 3H)

    # Shared bias layout: [b_r (=b_ih_r+b_hh_r) | b_z | b_in | b_hn]
    bg = jnp.zeros((1, 4 * Hp), jnp.float32)
    bg = bg.at[:, 0:H].set(b_ih[:, 0:H] + b_hh[:, 0:H])
    bg = bg.at[:, Hp:Hp + H].set(b_ih[:, H:2 * H] + b_hh[:, H:2 * H])
    bg = bg.at[:, 2 * Hp:2 * Hp + H].set(b_ih[:, 2 * H:3 * H])
    bg = bg.at[:, 3 * Hp:3 * Hp + H].set(b_hh[:, 2 * H:3 * H])

    prep = {
        "W_i": wi.astype(jnp.bfloat16), "b_i": bi, "tresh": tresh, "decay": decay,
        "b_g": bg, "fused": bool(fused),
        "IN": IN, "H": H, "INp": INp, "Hp": Hp,
    }

    if fused:
        wg = jnp.zeros((2 * Hp, 4 * Hp), jnp.float32)
        wg = wg.at[:H, 0:H].set(w_ih[:, 0:H])                        # i_r
        wg = wg.at[:H, Hp:Hp + H].set(w_ih[:, H:2 * H])              # i_z
        wg = wg.at[:H, 2 * Hp:2 * Hp + H].set(w_ih[:, 2 * H:3 * H])  # i_n
        wg = wg.at[Hp:Hp + H, 0:H].set(w_hh[:, 0:H])                 # h_r
        wg = wg.at[Hp:Hp + H, Hp:Hp + H].set(w_hh[:, H:2 * H])       # h_z
        wg = wg.at[Hp:Hp + H, 3 * Hp:3 * Hp + H].set(w_hh[:, 2 * H:3 * H])  # h_n
        prep["W_g"] = wg.astype(jnp.bfloat16)
    else:
        wga = jnp.zeros((Hp, 3 * Hp), jnp.float32)    # activated path: [i_r | i_z | i_n]
        wga = wga.at[:H, 0:H].set(w_ih[:, 0:H])
        wga = wga.at[:H, Hp:Hp + H].set(w_ih[:, H:2 * H])
        wga = wga.at[:H, 2 * Hp:2 * Hp + H].set(w_ih[:, 2 * H:3 * H])
        wgh = jnp.zeros((Hp, 3 * Hp), jnp.float32)    # hidden path: [h_r | h_z | h_n]
        wgh = wgh.at[:H, 0:H].set(w_hh[:, 0:H])
        wgh = wgh.at[:H, Hp:Hp + H].set(w_hh[:, H:2 * H])
        wgh = wgh.at[:H, 2 * Hp:2 * Hp + H].set(w_hh[:, 2 * H:3 * H])
        prep["W_ga"] = wga.astype(jnp.bfloat16)
        prep["W_gh"] = wgh.astype(jnp.bfloat16)
    return prep


# ---------------------------------------------------------------------------
# Single-step wrapper (matches PGLU_GRU.forward).  State inputs are aliased
# onto the outputs so repeated stepping reuses the HBM state buffers.
# ---------------------------------------------------------------------------
def pglu_gru(x, h_prev, potential_prev, prep):
    B = x.shape[0]
    IN, H = prep["IN"], prep["H"]
    INp, Hp = prep["INp"], prep["Hp"]
    fused = prep["fused"]
    gen = _chip_generation()
    TB, Bp = _choose_batch_tile(B, gen)

    x_p = jnp.zeros((Bp, INp), jnp.bfloat16).at[:B, :IN].set(x.astype(jnp.bfloat16))
    h_p = jnp.zeros((Bp, Hp), jnp.float32).at[:B, :H].set(h_prev)
    pot_p = jnp.zeros((Bp, Hp), jnp.float32).at[:B, :H].set(potential_prev)

    row_x = pl.BlockSpec((TB, INp), lambda i: (i, 0))
    row_h = pl.BlockSpec((TB, Hp), lambda i: (i, 0))

    def const(shape):
        return pl.BlockSpec(shape, lambda i: (0, 0))   # VMEM-resident across tiles

    if fused:
        in_specs = [row_x, row_h, row_h,
                    const((INp, Hp)), const((1, Hp)), const((1, Hp)), const((1, Hp)),
                    const((2 * Hp, 4 * Hp)), const((1, 4 * Hp))]
        args = (x_p, h_p, pot_p, prep["W_i"], prep["b_i"], prep["tresh"],
                prep["decay"], prep["W_g"], prep["b_g"])
    else:
        in_specs = [row_x, row_h, row_h,
                    const((INp, Hp)), const((1, Hp)), const((1, Hp)), const((1, Hp)),
                    const((Hp, 3 * Hp)), const((Hp, 3 * Hp)), const((1, 4 * Hp))]
        args = (x_p, h_p, pot_p, prep["W_i"], prep["b_i"], prep["tresh"],
                prep["decay"], prep["W_ga"], prep["W_gh"], prep["b_g"])

    h_new_p, pot_new_p = pl.pallas_call(
        _make_step_kernel(fused),
        out_shape=(jax.ShapeDtypeStruct((Bp, Hp), jnp.float32),   # h_new
                   jax.ShapeDtypeStruct((Bp, Hp), jnp.float32)),  # potential_out
        grid=(Bp // TB,),
        in_specs=in_specs,
        out_specs=(row_h, row_h),
        input_output_aliases={1: 0, 2: 1},   # h_prev -> h_new, pot_prev -> pot_out
        compiler_params=pltpu.CompilerParams(
            dimension_semantics=("parallel",),    # v7x: shard batch tiles over both TCs
            vmem_limit_bytes=_vmem_limit_bytes(TB, INp, Hp, fused)),
    )(*args)

    return h_new_p[:B, :H], pot_new_p[:B, :H]


# ---------------------------------------------------------------------------
# Full-sequence wrapper: time loop inside the kernel (grid=(batch_tiles, T)).
# Weights are fetched once per batch tile; h/potential stay in VMEM across T.
# ---------------------------------------------------------------------------
def pglu_gru_sequence(x_seq, h0, pot0, prep):
    """x_seq: (T, B, IN).  Returns h_seq (T, B, H) and final potential (B, H)."""
    T, B, IN = x_seq.shape
    H = prep["H"]
    INp, Hp = prep["INp"], prep["Hp"]
    fused = prep["fused"]
    gen = _chip_generation()
    TB, Bp = _choose_batch_tile(B, gen)
    nb = Bp // TB

    x_p = jnp.zeros((T, Bp, INp), jnp.bfloat16).at[:, :B, :IN].set(
        x_seq.astype(jnp.bfloat16))
    h_p = jnp.zeros((Bp, Hp), jnp.float32).at[:B, :H].set(h0)
    pot_p = jnp.zeros((Bp, Hp), jnp.float32).at[:B, :H].set(pot0)

    x_spec = pl.BlockSpec((1, TB, INp), lambda i, t: (t, i, 0))
    state_spec = pl.BlockSpec((TB, Hp), lambda i, t: (i, 0))      # resident across T
    hseq_spec = pl.BlockSpec((1, TB, Hp), lambda i, t: (t, i, 0))

    def const(shape):
        return pl.BlockSpec(shape, lambda i, t: (0, 0))           # weights resident

    if fused:
        w_specs = [const((INp, Hp)), const((1, Hp)), const((1, Hp)), const((1, Hp)),
                   const((2 * Hp, 4 * Hp)), const((1, 4 * Hp))]
        weights = (prep["W_i"], prep["b_i"], prep["tresh"], prep["decay"],
                   prep["W_g"], prep["b_g"])
    else:
        w_specs = [const((INp, Hp)), const((1, Hp)), const((1, Hp)), const((1, Hp)),
                   const((Hp, 3 * Hp)), const((Hp, 3 * Hp)), const((1, 4 * Hp))]
        weights = (prep["W_i"], prep["b_i"], prep["tresh"], prep["decay"],
                   prep["W_ga"], prep["W_gh"], prep["b_g"])

    extra = 2 * TB * Hp * 4 + 2 * TB * Hp * 4   # state scratch + h_seq out tiles
    vmem_limit = _vmem_limit_bytes(TB, INp, Hp, fused, extra_bytes=extra)

    h_seq_p, pot_f_p = pl.pallas_call(
        _make_seq_kernel(fused),
        out_shape=(jax.ShapeDtypeStruct((T, Bp, Hp), jnp.float32),  # h at every step
                   jax.ShapeDtypeStruct((Bp, Hp), jnp.float32)),    # final potential
        grid=(nb, T),
        in_specs=[x_spec, state_spec, state_spec] + w_specs,
        out_specs=(hseq_spec, state_spec),
        scratch_shapes=[pltpu.VMEM((TB, Hp), jnp.float32),          # h carry
                        pltpu.VMEM((TB, Hp), jnp.float32)],         # potential carry
        compiler_params=pltpu.CompilerParams(
            dimension_semantics=("parallel", "arbitrary"),
            vmem_limit_bytes=vmem_limit),
    )(x_p, h_p, pot_p, *weights)

    return h_seq_p[:, :B, :H], pot_f_p[:B, :H]


# ---------------------------------------------------------------------------
# Init + reference (reference uses the same bf16 matmul operands as the kernel)
# ---------------------------------------------------------------------------
def scaled_bell_capped(key, n, center, sigma):
    v = sigma * jax.random.normal(key, (n,), dtype=jnp.float32)
    v = jnp.clip(v, -2.0 * sigma, 2.0 * sigma)
    return center + v


def init_params(key, input_size, hidden_size):
    ks = jax.random.split(key, 10)
    H, IN = hidden_size, input_size
    scale_i = 1.0 / jnp.sqrt(IN)
    scale_h = 1.0 / jnp.sqrt(H)
    return {
        "W_i": jax.random.uniform(ks[0], (IN, H), jnp.float32, -scale_i, scale_i),
        "b_i": jax.random.uniform(ks[1], (1, H), jnp.float32, -scale_i, scale_i),
        "tresh": scaled_bell_capped(ks[2], H, 0.5, 0.1).reshape(1, H),
        "decay": scaled_bell_capped(ks[3], H, 0.9, 0.05).reshape(1, H),
        "W_ih": jax.random.uniform(ks[4], (H, 3 * H), jnp.float32, -scale_h, scale_h),
        "W_hh": jax.random.uniform(ks[5], (H, 3 * H), jnp.float32, -scale_h, scale_h),
        "b_ih": jax.random.uniform(ks[6], (1, 3 * H), jnp.float32, -scale_h, scale_h),
        "b_hh": jax.random.uniform(ks[7], (1, 3 * H), jnp.float32, -scale_h, scale_h),
    }


def reference(x, h_prev, pot_prev, p):
    H = h_prev.shape[1]
    bf = lambda a: a.astype(jnp.bfloat16)
    dot = lambda a, b: jnp.dot(bf(a), bf(b), preferred_element_type=jnp.float32)
    processed = dot(x, p["W_i"]) + p["b_i"]
    potential = pot_prev + processed
    gated = jnp.maximum(potential - p["tresh"], 0.0)
    fired = (gated > 0.0).astype(jnp.float32)          # InvertedBump indicator
    activated = fired * potential
    pot_out = potential * (1.0 - fired) * p["decay"]   # Bump indicator * decay
    gi = dot(activated, p["W_ih"]) + p["b_ih"]
    gh = dot(h_prev, p["W_hh"]) + p["b_hh"]
    r = jax.nn.sigmoid(gi[:, :H] + gh[:, :H])
    z = jax.nn.sigmoid(gi[:, H:2 * H] + gh[:, H:2 * H])
    n = jnp.tanh(gi[:, 2 * H:] + r * gh[:, 2 * H:])
    h_new = (1.0 - z) * n + z * h_prev
    return h_new, pot_out


if __name__ == "__main__":
    B, IN, H, T = 2, 16, 32, 8
    key = jax.random.PRNGKey(0)
    k_x, k_h, k_p, k_par, k_seq = jax.random.split(key, 5)

    x = jax.random.normal(k_x, (B, IN), dtype=jnp.float32)
    h_prev = jax.random.normal(k_h, (B, H), dtype=jnp.float32)
    potential_prev = jax.random.normal(k_p, (B, H), dtype=jnp.float32)
    params = init_params(k_par, IN, H)

    h_ref_v, pot_ref_v = reference(x, h_prev, potential_prev, params)

    # --- single step, both gate-matmul layouts (covers the v5e/Hp>=256 split
    # path and the v6e/v7x fused-at-Hp128 path regardless of the chip we run on)
    for fused in (True, False):
        prep = prepare_params(params, IN, H, fused=fused)
        h_new, pot_new = pglu_gru(x, h_prev, potential_prev, prep)
        jax.block_until_ready((h_new, pot_new))
        assert jnp.allclose(h_new, h_ref_v, atol=2e-3, rtol=2e-3), \
            f"h_new mismatch (fused={fused})"
        assert jnp.allclose(pot_new, pot_ref_v, atol=2e-3, rtol=2e-3), \
            f"potential mismatch (fused={fused})"

    # --- in-kernel time loop (grid=(batch_tiles, T)); weights + state VMEM-resident
    x_seq = jax.random.normal(k_seq, (T, B, IN), dtype=jnp.float32)
    prep_auto = prepare_params(params, IN, H)   # chip-auto gate layout
    h_seq, pot_fin = pglu_gru_sequence(x_seq, h_prev, potential_prev, prep_auto)
    jax.block_until_ready((h_seq, pot_fin))

    h_r, pot_r = h_prev, potential_prev
    h_seq_ref = []
    for t in range(T):
        h_r, pot_r = reference(x_seq[t], h_r, pot_r, params)
        h_seq_ref.append(h_r)
    h_seq_ref = jnp.stack(h_seq_ref, axis=0)
    assert jnp.allclose(h_seq, h_seq_ref, atol=5e-3, rtol=5e-3), "h_seq mismatch"
    assert jnp.allclose(pot_fin, pot_r, atol=5e-3, rtol=5e-3), "final potential mismatch"

    print("KERNEL_OK")
</pallas_src>

<mosaic_0001>
module attributes {stable_mosaic.version = 11 : i64} {
  func.func @kernel(%arg0: i32, %arg1: memref<8x128xbf16, #tpu.memory_space<vmem>>, %arg2: memref<8x128xf32, #tpu.memory_space<vmem>>, %arg3: memref<8x128xf32, #tpu.memory_space<vmem>>, %arg4: memref<128x128xbf16, #tpu.memory_space<vmem>>, %arg5: memref<1x128xf32, #tpu.memory_space<vmem>>, %arg6: memref<1x128xf32, #tpu.memory_space<vmem>>, %arg7: memref<1x128xf32, #tpu.memory_space<vmem>>, %arg8: memref<256x512xbf16, #tpu.memory_space<vmem>>, %arg9: memref<1x512xf32, #tpu.memory_space<vmem>>, %arg10: memref<8x128xf32, #tpu.memory_space<vmem>>, %arg11: memref<8x128xf32, #tpu.memory_space<vmem>>) attributes {dimension_semantics = [#tpu.dimension_semantics<parallel>], iteration_bounds = array<i64: 1>, scalar_prefetch = 0 : i64, scratch_operands = 0 : i64, tpu.core_type = #tpu.core_type<tc>, window_params = [{transform_indices = @transform_0, window_bounds = array<i64: 8, 128>}, {transform_indices = @transform_1, window_bounds = array<i64: 8, 128>}, {transform_indices = @transform_2, window_bounds = array<i64: 8, 128>}, {pipeline_mode = #tpu.pipeline_mode<synchronous>, transform_indices = @transform_3, window_bounds = array<i64: 128, 128>}, {pipeline_mode = #tpu.pipeline_mode<synchronous>, transform_indices = @transform_4, window_bounds = array<i64: 1, 128>}, {pipeline_mode = #tpu.pipeline_mode<synchronous>, transform_indices = @transform_5, window_bounds = array<i64: 1, 128>}, {pipeline_mode = #tpu.pipeline_mode<synchronous>, transform_indices = @transform_6, window_bounds = array<i64: 1, 128>}, {pipeline_mode = #tpu.pipeline_mode<synchronous>, transform_indices = @transform_7, window_bounds = array<i64: 256, 512>}, {pipeline_mode = #tpu.pipeline_mode<synchronous>, transform_indices = @transform_8, window_bounds = array<i64: 1, 512>}, {transform_indices = @transform_9, window_bounds = array<i64: 8, 128>}, {transform_indices = @transform_10, window_bounds = array<i64: 8, 128>}]} {
    %c0 = arith.constant 0 : index
    %c0_0 = arith.constant 0 : index
    %0 = vector.load %arg1[%c0, %c0_0] : memref<8x128xbf16, #tpu.memory_space<vmem>>, vector<8x128xbf16>
    %c0_1 = arith.constant 0 : index
    %c0_2 = arith.constant 0 : index
    %1 = vector.load %arg3[%c0_1, %c0_2] : memref<8x128xf32, #tpu.memory_space<vmem>>, vector<8x128xf32>
    %c0_3 = arith.constant 0 : index
    %c0_4 = arith.constant 0 : index
    %2 = vector.load %arg4[%c0_3, %c0_4] : memref<128x128xbf16, #tpu.memory_space<vmem>>, vector<128x128xbf16>
    %c0_5 = arith.constant 0 : index
    %c0_6 = arith.constant 0 : index
    %3 = vector.load %arg5[%c0_5, %c0_6] : memref<1x128xf32, #tpu.memory_space<vmem>>, vector<1x128xf32>
    %c0_7 = arith.constant 0 : index
    %c0_8 = arith.constant 0 : index
    %4 = vector.load %arg6[%c0_7, %c0_8] : memref<1x128xf32, #tpu.memory_space<vmem>>, vector<1x128xf32>
    %c0_9 = arith.constant 0 : index
    %c0_10 = arith.constant 0 : index
    %5 = vector.load %arg7[%c0_9, %c0_10] : memref<1x128xf32, #tpu.memory_space<vmem>>, vector<1x128xf32>
    %cst = arith.constant dense<0.000000e+00> : vector<8x128xf32>
    %6 = tpu.matmul %0, %2, %cst {dimension_numbers = #tpu.dot_dimension_numbers<[1], [0], [0], [1], [0, 0, 1, 1], [], []>} : vector<8x128xbf16>, vector<128x128xbf16>, vector<8x128xf32> -> vector<8x128xf32>
    %7 = vector.broadcast %3 : vector<1x128xf32> to vector<8x128xf32>
    %8 = arith.addf %6, %7 : vector<8x128xf32>
    %9 = arith.addf %1, %8 : vector<8x128xf32>
    %10 = vector.broadcast %4 : vector<1x128xf32> to vector<8x128xf32>
    %11 = arith.cmpf ogt, %9, %10 : vector<8x128xf32>
    %cst_11 = arith.constant 0.000000e+00 : f32
    %12 = vector.broadcast %cst_11 : f32 to vector<8x128xf32>
    %13 = arith.select %11, %9, %12 : vector<8x128xi1>, vector<8x128xf32>
    %cst_12 = arith.constant 0.000000e+00 : f32
    %14 = vector.broadcast %cst_12 : f32 to vector<8x128xf32>
    %15 = arith.select %11, %14, %9 : vector<8x128xi1>, vector<8x128xf32>
    %16 = vector.broadcast %5 : vector<1x128xf32> to vector<8x128xf32>
    %17 = arith.mulf %15, %16 : vector<8x128xf32>
    %c0_13 = arith.constant 0 : index
    %c0_14 = arith.constant 0 : index
    %18 = vector.load %arg11[%c0_13, %c0_14] : memref<8x128xf32, #tpu.memory_space<vmem>>, vector<8x128xf32>
    tpu.vector_store %arg11[%c0_13, %c0_14], %17 {strides = array<i32>} : memref<8x128xf32, #tpu.memory_space<vmem>>, vector<8x128xf32>,
    %c0_15 = arith.constant 0 : index
    %c0_16 = arith.constant 0 : index
    %19 = vector.load %arg2[%c0_15, %c0_16] : memref<8x128xf32, #tpu.memory_space<vmem>>, vector<8x128xf32>
    %c0_17 = arith.constant 0 : index
    %c0_18 = arith.constant 0 : index
    %20 = vector.load %arg8[%c0_17, %c0_18] : memref<256x512xbf16, #tpu.memory_space<vmem>>, vector<256x512xbf16>
    %c0_19 = arith.constant 0 : index
    %c0_20 = arith.constant 0 : index
    %21 = vector.load %arg9[%c0_19, %c0_20] : memref<1x512xf32, #tpu.memory_space<vmem>>, vector<1x512xf32>
    %22 = arith.truncf %13 : vector<8x128xf32> to vector<8x128xbf16>
    %23 = arith.truncf %19 : vector<8x128xf32> to vector<8x128xbf16>
    %24 = tpu.concatenate %22, %23 in 1 : vector<8x128xbf16>, vector<8x128xbf16> -> vector<8x256xbf16>
    %cst_21 = arith.constant dense<0.000000e+00> : vector<8x512xf32>
    %25 = tpu.matmul %24, %20, %cst_21 {dimension_numbers = #tpu.dot_dimension_numbers<[1], [0], [0], [1], [0, 0, 1, 1], [], []>} : vector<8x256xbf16>, vector<256x512xbf16>, vector<8x512xf32> -> vector<8x512xf32>
    %26 = vector.broadcast %21 : vector<1x512xf32> to vector<8x512xf32>
    %27 = arith.addf %25, %26 : vector<8x512xf32>
    %28 = vector.extract_strided_slice %27 {offsets = [0, 0], sizes = [8, 128], strides = [1, 1]} : vector<8x512xf32> to vector<8x128xf32>
    %29 = arith.negf %28 : vector<8x128xf32>
    %30 = math.exp %29 : vector<8x128xf32>
    %cst_22 = arith.constant 1.000000e+00 : f32
    %31 = vector.broadcast %cst_22 : f32 to vector<8x128xf32>
    %32 = arith.addf %31, %30 : vector<8x128xf32>
    %33 = arith.divf %31, %32 : vector<8x128xf32>
    %34 = vector.extract_strided_slice %27 {offsets = [0, 128], sizes = [8, 128], strides = [1, 1]} : vector<8x512xf32> to vector<8x128xf32>
    %35 = arith.negf %34 : vector<8x128xf32>
    %36 = math.exp %35 : vector<8x128xf32>
    %cst_23 = arith.constant 1.000000e+00 : f32
    %37 = vector.broadcast %cst_23 : f32 to vector<8x128xf32>
    %38 = arith.addf %37, %36 : vector<8x128xf32>
    %39 = arith.divf %37, %38 : vector<8x128xf32>
    %40 = vector.extract_strided_slice %27 {offsets = [0, 256], sizes = [8, 128], strides = [1, 1]} : vector<8x512xf32> to vector<8x128xf32>
    %41 = vector.extract_strided_slice %27 {offsets = [0, 384], sizes = [8, 128], strides = [1, 1]} : vector<8x512xf32> to vector<8x128xf32>
    %42 = arith.mulf %33, %41 : vector<8x128xf32>
    %43 = arith.addf %40, %42 : vector<8x128xf32>
    %44 = math.tanh %43 : vector<8x128xf32>
    %cst_24 = arith.constant 1.000000e+00 : f32
    %45 = vector.broadcast %cst_24 : f32 to vector<8x128xf32>
    %46 = arith.subf %45, %39 : vector<8x128xf32>
    %47 = arith.mulf %46, %44 : vector<8x128xf32>
    %48 = arith.mulf %39, %19 : vector<8x128xf32>
    %49 = arith.addf %47, %48 : vector<8x128xf32>
    %c0_25 = arith.constant 0 : index
    %c0_26 = arith.constant 0 : index
    %50 = vector.load %arg10[%c0_25, %c0_26] : memref<8x128xf32, #tpu.memory_space<vmem>>, vector<8x128xf32>
    tpu.vector_store %arg10[%c0_25, %c0_26], %49 {strides = array<i32>} : memref<8x128xf32, #tpu.memory_space<vmem>>, vector<8x128xf32>,
    return
  }
  func.func @transform_0(%arg0: i32) -> (i32, i32) {
    %c0_i32 = arith.constant 0 : i32
    %c0_i32_0 = arith.constant 0 : i32
    return %arg0, %c0_i32 : i32, i32
  }
  func.func @transform_1(%arg0: i32) -> (i32, i32) {
    %c0_i32 = arith.constant 0 : i32
    %c0_i32_0 = arith.constant 0 : i32
    return %arg0, %c0_i32 : i32, i32
  }
  func.func @transform_2(%arg0: i32) -> (i32, i32) {
    %c0_i32 = arith.constant 0 : i32
    %c0_i32_0 = arith.constant 0 : i32
    return %arg0, %c0_i32 : i32, i32
  }
  func.func @transform_3(%arg0: i32) -> (i32, i32) {
    %c0_i32 = arith.constant 0 : i32
    %c0_i32_0 = arith.constant 0 : i32
    %c0_i32_1 = arith.constant 0 : i32
    return %c0_i32, %c0_i32_0 : i32, i32
  }
  func.func @transform_4(%arg0: i32) -> (i32, i32) {
    %c0_i32 = arith.constant 0 : i32
    %c0_i32_0 = arith.constant 0 : i32
    %c0_i32_1 = arith.constant 0 : i32
    return %c0_i32, %c0_i32_0 : i32, i32
  }
  func.func @transform_5(%arg0: i32) -> (i32, i32) {
    %c0_i32 = arith.constant 0 : i32
    %c0_i32_0 = arith.constant 0 : i32
    %c0_i32_1 = arith.constant 0 : i32
    return %c0_i32, %c0_i32_0 : i32, i32
  }
  func.func @transform_6(%arg0: i32) -> (i32, i32) {
    %c0_i32 = arith.constant 0 : i32
    %c0_i32_0 = arith.constant 0 : i32
    %c0_i32_1 = arith.constant 0 : i32
    return %c0_i32, %c0_i32_0 : i32, i32
  }
  func.func @transform_7(%arg0: i32) -> (i32, i32) {
    %c0_i32 = arith.constant 0 : i32
    %c0_i32_0 = arith.constant 0 : i32
    %c0_i32_1 = arith.constant 0 : i32
    return %c0_i32, %c0_i32_0 : i32, i32
  }
  func.func @transform_8(%arg0: i32) -> (i32, i32) {
    %c0_i32 = arith.constant 0 : i32
    %c0_i32_0 = arith.constant 0 : i32
    %c0_i32_1 = arith.constant 0 : i32
    return %c0_i32, %c0_i32_0 : i32, i32
  }
  func.func @transform_9(%arg0: i32) -> (i32, i32) {
    %c0_i32 = arith.constant 0 : i32
    %c0_i32_0 = arith.constant 0 : i32
    return %arg0, %c0_i32 : i32, i32
  }
  func.func @transform_10(%arg0: i32) -> (i32, i32) {
    %c0_i32 = arith.constant 0 : i32
    %c0_i32_0 = arith.constant 0 : i32
    return %arg0, %c0_i32 : i32, i32
  }
}

</mosaic_0001>

<llo_original>
// kernel: tpu_custom_call.1
$region0: #{tpu_custom_call.1}
  #allocation0 [shape = 'u32[]', space=smem, size = 0x4, offset = 0x4, fixed_abs, tag = 'smem constant byte address 0x4 - core index']
  #allocation1 [shape = 'u32[144,128]{1,0:T(1,128)}', space=vmem, size = 0x12000, scoped, tag = 'internal scratch']
  %s0 = inlined_call_operand.vmem [shape: bf16[8,128], index: 0, kind: input, shape index: {}]
  %s1 = inlined_call_operand.hbm [shape: f32[8,128], index: 1, kind: input, shape index: {}, may-alias: {1,9}]
  %s2 = inlined_call_operand.hbm [shape: f32[8,128], index: 2, kind: input, shape index: {}, may-alias: {2,10}]
  %s3 = inlined_call_operand.hbm [shape: bf16[128,128], index: 3, kind: input, shape index: {}]
  %s4 = inlined_call_operand.vmem [shape: f32[1,128], index: 4, kind: input, shape index: {}]
  %s5 = inlined_call_operand.vmem [shape: f32[1,128], index: 5, kind: input, shape index: {}]
  %s6 = inlined_call_operand.vmem [shape: f32[1,128], index: 6, kind: input, shape index: {}]
  %s7 = inlined_call_operand.hbm [shape: bf16[256,512], index: 7, kind: input, shape index: {}]
  %s8 = inlined_call_operand.vmem [shape: f32[1,512], index: 8, kind: input, shape index: {}]
  %s9 = inlined_call_operand.hbm [shape: f32[8,128], index: 9, kind: output, shape index: {0}, may-alias: {1,9}]
  %s10 = inlined_call_operand.hbm [shape: f32[8,128], index: 10, kind: output, shape index: {1}, may-alias: {2,10}]
  %11 = xla_tuple %s9, %s10
  %s12 = sld [smem:[#allocation0]]
  $region70: #{tpu_custom_call.1} parent=0
    _
  %s14 = ssub.s32 1, %s12
  %s15 = scalar_select 0, %s14, %s12
  $region1: #{tpu_custom_call.1} parent=0
    #allocation2 [shape = 'u8[4096]{0}', space=vmem, size = 0x1000, scoped, tag = 'input window, operand 1, single buffered']
    #allocation3 [shape = 's32[1]{0}', space=sflag, size = 0x4, scoped, tag = 'scoped memory for tpu_custom_call.1']
    #allocation4 [shape = 's32[1]{0}', space=sflag, size = 0x4, scoped, tag = 'scoped memory for tpu_custom_call.1']
    #allocation5 [shape = 'u8[4096]{0}', space=vmem, size = 0x1000, scoped, tag = 'input window, operand 2, single buffered']
    #allocation6 [shape = 's32[1]{0}', space=sflag, size = 0x4, scoped, tag = 'scoped memory for tpu_custom_call.1']
    #allocation7 [shape = 'u8[32768]{0}', space=vmem, size = 0x8000, scoped, tag = 'input window, operand 3, single buffered']
    #allocation8 [shape = 'u8[262144]{0}', space=vmem, size = 0x40000, scoped, tag = 'input window, operand 7, single buffered']
    #allocation9 [shape = 's32[1]{0}', space=sflag, size = 0x4, scoped, tag = 'scoped memory for tpu_custom_call.1']
    #allocation10 [shape = 'u8[4096]{0}', space=vmem, size = 0x1000, scoped, tag = 'output window, operand 0, single buffered']
    #allocation11 [shape = 'u8[4096]{0}', space=vmem, size = 0x1000, scoped, tag = 'output window, operand 1, single buffered']
    #allocation12 [shape = 's32[1]{0}', space=sflag, size = 0x4, scoped, tag = 'scoped memory for tpu_custom_call.1']
    %16 = vsyncpa [#allocation3], 0
    %17 = vsyncpa [#allocation6], 0
    %18 = vsyncpa [#allocation9], 0
    %19 = vsyncpa [#allocation4], 0
    %20 = vsyncpa [#allocation12], 0
    // Predicated region
    $region2: #{tpu_custom_call.1} parent=1 // pred_check
      _
    $region3: #{tpu_custom_call.1} parent=1 // pred_check_branch
      %22 = sbr.rel (0) target = $region5
    $region4: #{tpu_custom_call.1} parent=1 // pred_region
      _
    $region5: #{tpu_custom_call.1} parent=1 // pred_fallthru
      _
    // Predicated region
    $region6: #{tpu_custom_call.1} parent=1 // pred_check
      _
    $region7: #{tpu_custom_call.1} parent=1 // pred_check_branch
      %24 = sbr.rel (0) target = $region9
    $region8: #{tpu_custom_call.1} parent=1 // pred_region
      %s26 = ssub.s32 128, 128
      %27 = vsyncadd [#allocation3], %s26
      %s29 = sshll.u32 [#allocation2], 4
      %s30 = int_to_ptr.vmem [resolvable:$true] %s29
      %32 = dma.hbm_to_vmem [thread:$0]  %s1, 128, %s30, [#allocation3]
    $region9: #{tpu_custom_call.1} parent=1 // pred_fallthru
      _
    // Predicated region
    $region10: #{tpu_custom_call.1} parent=1 // pred_check
      _
    $region11: #{tpu_custom_call.1} parent=1 // pred_check_branch
      %34 = sbr.rel (0) target = $region13
    $region12: #{tpu_custom_call.1} parent=1 // pred_region
      %s36 = ssub.s32 128, 128
      %37 = vsyncadd [#allocation6], %s36
      %s39 = sshll.u32 [#allocation5], 4
      %s40 = int_to_ptr.vmem [resolvable:$true] %s39
      %42 = dma.hbm_to_vmem [thread:$0]  %s2, 128, %s40, [#allocation6]
    $region13: #{tpu_custom_call.1} parent=1 // pred_fallthru
      _
    // Predicated region
    $region14: #{tpu_custom_call.1} parent=1 // pred_check
      _
    $region15: #{tpu_custom_call.1} parent=1 // pred_check_branch
      %44 = sbr.rel (0) target = $region17
    $region16: #{tpu_custom_call.1} parent=1 // pred_region
      %s46 = ssub.s32 1024, 1024
      %47 = vsyncadd [#allocation6], %s46
      %s48 = sshll.u32 [#allocation7], 4
      %s49 = int_to_ptr.vmem [resolvable:$true] %s48
      %54 = dma.hbm_to_vmem [thread:$0]  %s3, 1024, %s49, [#allocation6], 64, 64, 4
    $region17: #{tpu_custom_call.1} parent=1 // pred_fallthru
      _
    // Predicated region
    $region18: #{tpu_custom_call.1} parent=1 // pred_check
      _
    $region19: #{tpu_custom_call.1} parent=1 // pred_check_branch
      %56 = sbr.rel (0) target = $region21
    $region20: #{tpu_custom_call.1} parent=1 // pred_region
      _
    $region21: #{tpu_custom_call.1} parent=1 // pred_fallthru
      _
    // Predicated region
    $region22: #{tpu_custom_call.1} parent=1 // pred_check
      _
    $region23: #{tpu_custom_call.1} parent=1 // pred_check_branch
      %58 = sbr.rel (0) target = $region25
    $region24: #{tpu_custom_call.1} parent=1 // pred_region
      _
    $region25: #{tpu_custom_call.1} parent=1 // pred_fallthru
      _
    // Predicated region
    $region26: #{tpu_custom_call.1} parent=1 // pred_check
      _
    $region27: #{tpu_custom_call.1} parent=1 // pred_check_branch
      %60 = sbr.rel (0) target = $region29
    $region28: #{tpu_custom_call.1} parent=1 // pred_region
      _
    $region29: #{tpu_custom_call.1} parent=1 // pred_fallthru
      _
    // Predicated region
    $region30: #{tpu_custom_call.1} parent=1 // pred_check
      _
    $region31: #{tpu_custom_call.1} parent=1 // pred_check_branch
      %62 = sbr.rel (0) target = $region33
    $region32: #{tpu_custom_call.1} parent=1 // pred_region
      %s64 = ssub.s32 8192, 8192
      %65 = vsyncadd [#allocation9], %s64
      %s66 = sshll.u32 [#allocation8], 4
      %s67 = int_to_ptr.vmem [resolvable:$true] %s66
      %72 = dma.hbm_to_vmem [thread:$0]  %s7, 8192, %s67, [#allocation9], 256, 256, 16
    $region33: #{tpu_custom_call.1} parent=1 // pred_fallthru
      _
    // Predicated region
    $region34: #{tpu_custom_call.1} parent=1 // pred_check
      _
    $region35: #{tpu_custom_call.1} parent=1 // pred_check_branch
      %74 = sbr.rel (0) target = $region37
    $region36: #{tpu_custom_call.1} parent=1 // pred_region
      _
    $region37: #{tpu_custom_call.1} parent=1 // pred_fallthru
      _
    // Predicated region
    $region38: #{tpu_custom_call.1} parent=1 // pred_check
      _
    $region39: #{tpu_custom_call.1} parent=1 // pred_check_branch
      %76 = sbr.rel (0) target = $region41
    $region40: #{tpu_custom_call.1} parent=1 // pred_region
      %77 = dma.done [#allocation3], 128
    $region41: #{tpu_custom_call.1} parent=1 // pred_fallthru
      _
    // Predicated region
    $region42: #{tpu_custom_call.1} parent=1 // pred_check
      _
    $region43: #{tpu_custom_call.1} parent=1 // pred_check_branch
      %79 = sbr.rel (0) target = $region45
    $region44: #{tpu_custom_call.1} parent=1 // pred_region
      %80 = dma.done [#allocation6], 128
    $region45: #{tpu_custom_call.1} parent=1 // pred_fallthru
      _
    // Predicated region
    $region46: #{tpu_custom_call.1} parent=1 // pred_check
      _
    $region47: #{tpu_custom_call.1} parent=1 // pred_check_branch
      %82 = sbr.rel (0) target = $region49
    $region48: #{tpu_custom_call.1} parent=1 // pred_region
      %83 = dma.done [#allocation6], 1024
    $region49: #{tpu_custom_call.1} parent=1 // pred_fallthru
      _
    // Predicated region
    $region50: #{tpu_custom_call.1} parent=1 // pred_check
      _
    $region51: #{tpu_custom_call.1} parent=1 // pred_check_branch
      %85 = sbr.rel (0) target = $region53
    $region52: #{tpu_custom_call.1} parent=1 // pred_region
      %86 = dma.done [#allocation9], 8192
    $region53: #{tpu_custom_call.1} parent=1 // pred_fallthru
      _
    %v88 = vld [vmem:[%s0] sm:$0xf]
    %v89 = vld [vmem:[#allocation5] sm:$0xff]
    %v90 = vld [vmem:[#allocation7] sm:$0xf]
    %v91 = vld [vmem:[#allocation7 + $0x4] sm:$0xf]
    %v92 = vld [vmem:[#allocation7 + $0x8] sm:$0xf]
    %v93 = vld [vmem:[#allocation7 + $0xc] sm:$0xf]
    %v94 = vld [vmem:[#allocation7 + $0x10] sm:$0xf]
    %v95 = vld [vmem:[#allocation7 + $0x14] sm:$0xf]
    %v96 = vld [vmem:[#allocation7 + $0x18] sm:$0xf]
    %v97 = vld [vmem:[#allocation7 + $0x1c] sm:$0xf]
    %v98 = vld [vmem:[#allocation7 + $0x20] sm:$0xf]
    %v99 = vld [vmem:[#allocation7 + $0x24] sm:$0xf]
    %v100 = vld [vmem:[#allocation7 + $0x28] sm:$0xf]
    %v101 = vld [vmem:[#allocation7 + $0x2c] sm:$0xf]
    %v102 = vld [vmem:[#allocation7 + $0x30] sm:$0xf]
    %v103 = vld [vmem:[#allocation7 + $0x34] sm:$0xf]
    %v104 = vld [vmem:[#allocation7 + $0x38] sm:$0xf]
    %v105 = vld [vmem:[#allocation7 + $0x3c] sm:$0xf]
    %v106 = vld [vmem:[%s4] sm:$0x1]
    %v107 = vld [vmem:[%s5] sm:$0x1]
    %v108 = vld [vmem:[%s6] sm:$0x1]
    %v110 = vlaneseq
    %v111 = vshrl.u32 %v110, 7
    %v112 = vsub.s32 0, %v111
    %v113 = vrot.slane %v106, %v112
    %v131 = vunpack.c.l.b16 %v90
    %v132 = vunpack.c.l.b16 %v91
    %v133 = vunpack.c.l.b16 %v92
    %v134 = vunpack.c.l.b16 %v93
    %v135 = vunpack.c.l.b16 %v94
    %v136 = vunpack.c.l.b16 %v95
    %v137 = vunpack.c.l.b16 %v96
    %v138 = vunpack.c.l.b16 %v97
    %v139 = vunpack.c.l.b16 %v98
    %v140 = vunpack.c.l.b16 %v99
    %v141 = vunpack.c.l.b16 %v100
    %v142 = vunpack.c.l.b16 %v101
    %v143 = vunpack.c.l.b16 %v102
    %v144 = vunpack.c.l.b16 %v103
    %v145 = vunpack.c.l.b16 %v104
    %v146 = vunpack.c.l.b16 %v105
    %v147 = vpack.c.b16 %v132, %v131
    %v148 = vpack.c.b16 %v134, %v133
    %v149 = vpack.c.b16 %v136, %v135
    %v150 = vpack.c.b16 %v138, %v137
    %v151 = vpack.c.b16 %v140, %v139
    %v152 = vpack.c.b16 %v142, %v141
    %v153 = vpack.c.b16 %v144, %v143
    %v154 = vpack.c.b16 %v146, %v145
    %163 = vmatprep.subr.bf16.mxu0 0
    %164 = vmatpush1.bf16.msra.mxu0 %v147
    %165 = vmatprep.subr.bf16.mxu0 0
    %166 = vmatpush1.bf16.msra.mxu0 %v148
    %167 = vmatprep.subr.bf16.mxu0 0
    %168 = vmatpush1.bf16.msra.mxu0 %v149
    %169 = vmatprep.subr.bf16.mxu0 0
    %170 = vmatpush1.bf16.msra.mxu0 %v150
    %171 = vmatprep.subr.bf16.mxu0 0
    %172 = vmatpush1.bf16.msra.mxu0 %v151
    %173 = vmatprep.subr.bf16.mxu0 0
    %174 = vmatpush1.bf16.msra.mxu0 %v152
    %175 = vmatprep.subr.bf16.mxu0 0
    %176 = vmatpush1.bf16.msra.mxu0 %v153
    %177 = vmatprep.subr.bf16.mxu0 0
    %178 = vmatpush1.bf16.msra.mxu0 %v154
    %179 = vmatprep.subr.bf16.mxu0 0
    %180 = vmatpush1.bf16.msra.mxu0 0
    %181 = vmatprep.subr.bf16.mxu0 0
    %182 = vmatpush1.bf16.msra.mxu0 0
    %183 = vmatprep.subr.bf16.mxu0 0
    %184 = vmatpush1.bf16.msra.mxu0 0
    %185 = vmatprep.subr.bf16.mxu0 0
    %186 = vmatpush1.bf16.msra.mxu0 0
    %187 = vmatprep.subr.bf16.mxu0 0
    %188 = vmatpush1.bf16.msra.mxu0 0
    %189 = vmatprep.subr.bf16.mxu0 0
    %190 = vmatpush1.bf16.msra.mxu0 0
    %191 = vmatprep.subr.bf16.mxu0 0
    %192 = vmatpush1.bf16.msra.mxu0 0
    %193 = vmatprep.subr.bf16.mxu0 0
    %194 = vmatpush1.bf16.msra.mxu0 0
    %195 = vmatprep.mubr.bf16.mxu0 0
    %196 = vmatmul.mubr.bf16.gmra.mrb[0].mxu0 %v88
    %v197 = vpop.f32.mrb[0].mxu0
    %v198 = vadd.f32 %v113, %v197
    %v199 = vpop.f32.mrb[0].mxu0
    %v200 = vpop.f32.mrb[0].mxu0
    %v201 = vpop.f32.mrb[0].mxu0
    %202 = vdwg.mxu0
    %v203 = vadd.f32 %v89, %v198
    %v205 = vlaneseq
    %v206 = vshrl.u32 %v205, 7
    %v207 = vsub.s32 0, %v206
    %v208 = vrot.slane %v107, %v207
    %vm210 = vcmp.gt.f32.partialorder %v203, %v208
    %v211 = vsel %vm210, %v203, 0.0
    %v212 = vsel %vm210, 0.0, %v203
    %v214 = vlaneseq
    %v215 = vshrl.u32 %v214, 7
    %v216 = vsub.s32 0, %v215
    %v217 = vrot.slane %v108, %v216
    %v219 = vmul.f32 %v212, %v217
    %220 = vst [vmem:[#allocation11] sm:$0xff] %v219
    %v221 = vld [vmem:[#allocation2] sm:$0xff]
    %v222 = vld [vmem:[#allocation8] sm:$0xff]
    %v223 = vld [vmem:[#allocation8 + $0x8] sm:$0xff]
    %v224 = vld [vmem:[#allocation8 + $0x10] sm:$0xff]
    %v225 = vld [vmem:[#allocation8 + $0x18] sm:$0xff]
    %v226 = vld [vmem:[#allocation8 + $0x20] sm:$0xff]
    %v227 = vld [vmem:[#allocation8 + $0x28] sm:$0xff]
    %v228 = vld [vmem:[#allocation8 + $0x30] sm:$0xff]
    %v229 = vld [vmem:[#allocation8 + $0x38] sm:$0xff]
    %v230 = vld [vmem:[#allocation8 + $0x40] sm:$0xff]
    %v231 = vld [vmem:[#allocation8 + $0x48] sm:$0xff]
    %v232 = vld [vmem:[#allocation8 + $0x50] sm:$0xff]
    %v233 = vld [vmem:[#allocation8 + $0x58] sm:$0xff]
    %v234 = vld [vmem:[#allocation8 + $0x60] sm:$0xff]
    %v235 = vld [vmem:[#allocation8 + $0x68] sm:$0xff]
    %v236 = vld [vmem:[#allocation8 + $0x70] sm:$0xff]
    %v237 = vld [vmem:[#allocation8 + $0x78] sm:$0xff]
    %v238 = vld [vmem:[#allocation8 + $0x80] sm:$0xff]
    %v239 = vld [vmem:[#allocation8 + $0x88] sm:$0xff]
    %v240 = vld [vmem:[#allocation8 + $0x90] sm:$0xff]
    %v241 = vld [vmem:[#allocation8 + $0x98] sm:$0xff]
    %v242 = vld [vmem:[#allocation8 + $0xa0] sm:$0xff]
    %v243 = vld [vmem:[#allocation8 + $0xa8] sm:$0xff]
    %v244 = vld [vmem:[#allocation8 + $0xb0] sm:$0xff]
    %v245 = vld [vmem:[#allocation8 + $0xb8] sm:$0xff]
    %v246 = vld [vmem:[#allocation8 + $0xc0] sm:$0xff]
    %v247 = vld [vmem:[#allocation8 + $0xc8] sm:$0xff]
    %v248 = vld [vmem:[#allocation8 + $0xd0] sm:$0xff]
    %v249 = vld [vmem:[#allocation8 + $0xd8] sm:$0xff]
    %v250 = vld [vmem:[#allocation8 + $0xe0] sm:$0xff]
    %v251 = vld [vmem:[#allocation8 + $0xe8] sm:$0xff]
    %v252 = vld [vmem:[#allocation8 + $0xf0] sm:$0xff]
    %v253 = vld [vmem:[#allocation8 + $0xf8] sm:$0xff]
    %v254 = vld [vmem:[#allocation8 + $0x100] sm:$0xff]
    %v255 = vld [vmem:[#allocation8 + $0x108] sm:$0xff]
    %v256 = vld [vmem:[#allocation8 + $0x110] sm:$0xff]
    %v257 = vld [vmem:[#allocation8 + $0x118] sm:$0xff]
    %v258 = vld [vmem:[#allocation8 + $0x120] sm:$0xff]
    %v259 = vld [vmem:[#allocation8 + $0x128] sm:$0xff]
    %v260 = vld [vmem:[#allocation8 + $0x130] sm:$0xff]
    %v261 = vld [vmem:[#allocation8 + $0x138] sm:$0xff]
    %v262 = vld [vmem:[#allocation8 + $0x140] sm:$0xff]
    %v263 = vld [vmem:[#allocation8 + $0x148] sm:$0xff]
    %v264 = vld [vmem:[#allocation8 + $0x150] sm:$0xff]
    %v265 = vld [vmem:[#allocation8 + $0x158] sm:$0xff]
    %v266 = vld [vmem:[#allocation8 + $0x160] sm:$0xff]
    %v267 = vld [vmem:[#allocation8 + $0x168] sm:$0xff]
    %v268 = vld [vmem:[#allocation8 + $0x170] sm:$0xff]
    %v269 = vld [vmem:[#allocation8 + $0x178] sm:$0xff]
    %v270 = vld [vmem:[#allocation8 + $0x180] sm:$0xff]
    %v271 = vld [vmem:[#allocation8 + $0x188] sm:$0xff]
    %v272 = vld [vmem:[#allocation8 + $0x190] sm:$0xff]
    %v273 = vld [vmem:[#allocation8 + $0x198] sm:$0xff]
    %v274 = vld [vmem:[#allocation8 + $0x1a0] sm:$0xff]
    %v275 = vld [vmem:[#allocation8 + $0x1a8] sm:$0xff]
    %v276 = vld [vmem:[#allocation8 + $0x1b0] sm:$0xff]
    %v277 = vld [vmem:[#allocation8 + $0x1b8] sm:$0xff]
    %v278 = vld [vmem:[#allocation8 + $0x1c0] sm:$0xff]
    %v279 = vld [vmem:[#allocation8 + $0x1c8] sm:$0xff]
    %v280 = vld [vmem:[#allocation8 + $0x1d0] sm:$0xff]
    %v281 = vld [vmem:[#allocation8 + $0x1d8] sm:$0xff]
    %v282 = vld [vmem:[#allocation8 + $0x1e0] sm:$0xff]
    %v283 = vld [vmem:[#allocation8 + $0x1e8] sm:$0xff]
    %v284 = vld [vmem:[#allocation8 + $0x1f0] sm:$0xff]
    %v285 = vld [vmem:[#allocation8 + $0x1f8] sm:$0xff]
    %v286 = vld [vmem:[%s8] sm:$0xf]
    %v287 = vpack.c.bf16 %v211, %v211
    %v288 = vpack.c.bf16 %v221, %v221
    %v290 = vlaneseq
    %v291 = vshrl.u32 %v290, 7
    %v292 = vsub.s32 0, %v291
    %v293 = vrot.slane %v286, %v292
    %v294 = vlaneseq
    %v295 = vshrl.u32 %v294, 7
    %v296 = vsub.s32 1, %v295
    %v297 = vrot.slane %v286, %v296
    %v298 = vlaneseq
    %v299 = vshrl.u32 %v298, 7
    %v300 = vsub.s32 2, %v299
    %v301 = vrot.slane %v286, %v300
    %v302 = vlaneseq
    %v303 = vshrl.u32 %v302, 7
    %v304 = vsub.s32 3, %v303
    %v305 = vrot.slane %v286, %v304
    %v374 = vunpack.c.l.b16 %v222
    %v375 = vunpack.c.h.b16 %v222
    %v376 = vunpack.c.l.b16 %v223
    %v377 = vunpack.c.h.b16 %v223
    %v378 = vunpack.c.l.b16 %v224
    %v379 = vunpack.c.h.b16 %v224
    %v380 = vunpack.c.l.b16 %v225
    %v381 = vunpack.c.h.b16 %v225
    %v382 = vunpack.c.l.b16 %v226
    %v383 = vunpack.c.h.b16 %v226
    %v384 = vunpack.c.l.b16 %v227
    %v385 = vunpack.c.h.b16 %v227
    %v386 = vunpack.c.l.b16 %v228
    %v387 = vunpack.c.h.b16 %v228
    %v388 = vunpack.c.l.b16 %v229
    %v389 = vunpack.c.h.b16 %v229
    %v390 = vunpack.c.l.b16 %v230
    %v391 = vunpack.c.h.b16 %v230
    %v392 = vunpack.c.l.b16 %v231
    %v393 = vunpack.c.h.b16 %v231
    %v394 = vunpack.c.l.b16 %v232
    %v395 = vunpack.c.h.b16 %v232
    %v396 = vunpack.c.l.b16 %v233
    %v397 = vunpack.c.h.b16 %v233
    %v398 = vunpack.c.l.b16 %v234
    %v399 = vunpack.c.h.b16 %v234
    %v400 = vunpack.c.l.b16 %v235
    %v401 = vunpack.c.h.b16 %v235
    %v402 = vunpack.c.l.b16 %v236
    %v403 = vunpack.c.h.b16 %v236
    %v404 = vunpack.c.l.b16 %v237
    %v405 = vunpack.c.h.b16 %v237
    %v406 = vunpack.c.l.b16 %v238
    %v407 = vunpack.c.h.b16 %v238
    %v408 = vunpack.c.l.b16 %v239
    %v409 = vunpack.c.h.b16 %v239
    %v410 = vunpack.c.l.b16 %v240
    %v411 = vunpack.c.h.b16 %v240
    %v412 = vunpack.c.l.b16 %v241
    %v413 = vunpack.c.h.b16 %v241
    %v414 = vunpack.c.l.b16 %v242
    %v415 = vunpack.c.h.b16 %v242
    %v416 = vunpack.c.l.b16 %v243
    %v417 = vunpack.c.h.b16 %v243
    %v418 = vunpack.c.l.b16 %v244
    %v419 = vunpack.c.h.b16 %v244
    %v420 = vunpack.c.l.b16 %v245
    %v421 = vunpack.c.h.b16 %v245
    %v422 = vunpack.c.l.b16 %v246
    %v423 = vunpack.c.h.b16 %v246
    %v424 = vunpack.c.l.b16 %v247
    %v425 = vunpack.c.h.b16 %v247
    %v426 = vunpack.c.l.b16 %v248
    %v427 = vunpack.c.h.b16 %v248
    %v428 = vunpack.c.l.b16 %v249
    %v429 = vunpack.c.h.b16 %v249
    %v430 = vunpack.c.l.b16 %v250
    %v431 = vunpack.c.h.b16 %v250
    %v432 = vunpack.c.l.b16 %v251
    %v433 = vunpack.c.h.b16 %v251
    %v434 = vunpack.c.l.b16 %v252
    %v435 = vunpack.c.h.b16 %v252
    %v436 = vunpack.c.l.b16 %v253
    %v437 = vunpack.c.h.b16 %v253
    %v438 = vunpack.c.l.b16 %v254
    %v439 = vunpack.c.h.b16 %v254
    %v440 = vunpack.c.l.b16 %v255
    %v441 = vunpack.c.h.b16 %v255
    %v442 = vunpack.c.l.b16 %v256
    %v443 = vunpack.c.h.b16 %v256
    %v444 = vunpack.c.l.b16 %v257
    %v445 = vunpack.c.h.b16 %v257
    %v446 = vunpack.c.l.b16 %v258
    %v447 = vunpack.c.h.b16 %v258
    %v448 = vunpack.c.l.b16 %v259
    %v449 = vunpack.c.h.b16 %v259
    %v450 = vunpack.c.l.b16 %v260
    %v451 = vunpack.c.h.b16 %v260
    %v452 = vunpack.c.l.b16 %v261
    %v453 = vunpack.c.h.b16 %v261
    %v454 = vunpack.c.l.b16 %v262
    %v455 = vunpack.c.h.b16 %v262
    %v456 = vunpack.c.l.b16 %v263
    %v457 = vunpack.c.h.b16 %v263
    %v458 = vunpack.c.l.b16 %v264
    %v459 = vunpack.c.h.b16 %v264
    %v460 = vunpack.c.l.b16 %v265
    %v461 = vunpack.c.h.b16 %v265
    %v462 = vunpack.c.l.b16 %v266
    %v463 = vunpack.c.h.b16 %v266
    %v464 = vunpack.c.l.b16 %v267
    %v465 = vunpack.c.h.b16 %v267
    %v466 = vunpack.c.l.b16 %v268
    %v467 = vunpack.c.h.b16 %v268
    %v468 = vunpack.c.l.b16 %v269
    %v469 = vunpack.c.h.b16 %v269
    %v470 = vunpack.c.l.b16 %v270
    %v471 = vunpack.c.h.b16 %v270
    %v472 = vunpack.c.l.b16 %v271
    %v473 = vunpack.c.h.b16 %v271
    %v474 = vunpack.c.l.b16 %v272
    %v475 = vunpack.c.h.b16 %v272
    %v476 = vunpack.c.l.b16 %v273
    %v477 = vunpack.c.h.b16 %v273
    %v478 = vunpack.c.l.b16 %v274
    %v479 = vunpack.c.h.b16 %v274
    %v480 = vunpack.c.l.b16 %v275
    %v481 = vunpack.c.h.b16 %v275
    %v482 = vunpack.c.l.b16 %v276
    %v483 = vunpack.c.h.b16 %v276
    %v484 = vunpack.c.l.b16 %v277
    %v485 = vunpack.c.h.b16 %v277
    %v486 = vunpack.c.l.b16 %v278
    %v487 = vunpack.c.h.b16 %v278
    %v488 = vunpack.c.l.b16 %v279
    %v489 = vunpack.c.h.b16 %v279
    %v490 = vunpack.c.l.b16 %v280
    %v491 = vunpack.c.h.b16 %v280
    %v492 = vunpack.c.l.b16 %v281
    %v493 = vunpack.c.h.b16 %v281
    %v494 = vunpack.c.l.b16 %v282
    %v495 = vunpack.c.h.b16 %v282
    %v496 = vunpack.c.l.b16 %v283
    %v497 = vunpack.c.h.b16 %v283
    %v498 = vunpack.c.l.b16 %v284
    %v499 = vunpack.c.h.b16 %v284
    %v500 = vunpack.c.l.b16 %v285
    %v501 = vunpack.c.h.b16 %v285
    %v502 = vpack.c.b16 %v378, %v374
    %v503 = vpack.c.b16 %v379, %v375
    %v504 = vpack.c.b16 %v380, %v376
    %v505 = vpack.c.b16 %v381, %v377
    %v506 = vpack.c.b16 %v386, %v382
    %v507 = vpack.c.b16 %v387, %v383
    %v508 = vpack.c.b16 %v388, %v384
    %v509 = vpack.c.b16 %v389, %v385
    %v510 = vpack.c.b16 %v394, %v390
    %v511 = vpack.c.b16 %v395, %v391
    %v512 = vpack.c.b16 %v396, %v392
    %v513 = vpack.c.b16 %v397, %v393
    %v514 = vpack.c.b16 %v402, %v398
    %v515 = vpack.c.b16 %v403, %v399
    %v516 = vpack.c.b16 %v404, %v400
    %v517 = vpack.c.b16 %v405, %v401
    %v518 = vpack.c.b16 %v410, %v406
    %v519 = vpack.c.b16 %v411, %v407
    %v520 = vpack.c.b16 %v412, %v408
    %v521 = vpack.c.b16 %v413, %v409
    %v522 = vpack.c.b16 %v418, %v414
    %v523 = vpack.c.b16 %v419, %v415
    %v524 = vpack.c.b16 %v420, %v416
    %v525 = vpack.c.b16 %v421, %v417
    %v526 = vpack.c.b16 %v426, %v422
    %v527 = vpack.c.b16 %v427, %v423
    %v528 = vpack.c.b16 %v428, %v424
    %v529 = vpack.c.b16 %v429, %v425
    %v530 = vpack.c.b16 %v434, %v430
    %v531 = vpack.c.b16 %v435, %v431
    %v532 = vpack.c.b16 %v436, %v432
    %v533 = vpack.c.b16 %v437, %v433
    %v534 = vpack.c.b16 %v442, %v438
    %v535 = vpack.c.b16 %v443, %v439
    %v536 = vpack.c.b16 %v444, %v440
    %v537 = vpack.c.b16 %v445, %v441
    %v538 = vpack.c.b16 %v450, %v446
    %v539 = vpack.c.b16 %v451, %v447
    %v540 = vpack.c.b16 %v452, %v448
    %v541 = vpack.c.b16 %v453, %v449
    %v542 = vpack.c.b16 %v458, %v454
    %v543 = vpack.c.b16 %v459, %v455
    %v544 = vpack.c.b16 %v460, %v456
    %v545 = vpack.c.b16 %v461, %v457
    %v546 = vpack.c.b16 %v466, %v462
    %v547 = vpack.c.b16 %v467, %v463
    %v548 = vpack.c.b16 %v468, %v464
    %v549 = vpack.c.b16 %v469, %v465
    %v550 = vpack.c.b16 %v474, %v470
    %v551 = vpack.c.b16 %v475, %v471
    %v552 = vpack.c.b16 %v476, %v472
    %v553 = vpack.c.b16 %v477, %v473
    %v554 = vpack.c.b16 %v482, %v478
    %v555 = vpack.c.b16 %v483, %v479
    %v556 = vpack.c.b16 %v484, %v480
    %v557 = vpack.c.b16 %v485, %v481
    %v558 = vpack.c.b16 %v490, %v486
    %v559 = vpack.c.b16 %v491, %v487
    %v560 = vpack.c.b16 %v492, %v488
    %v561 = vpack.c.b16 %v493, %v489
    %v562 = vpack.c.b16 %v498, %v494
    %v563 = vpack.c.b16 %v499, %v495
    %v564 = vpack.c.b16 %v500, %v496
    %v565 = vpack.c.b16 %v501, %v497
    %630 = vmatprep.subr.bf16.mxu0 %v503
    %631 = vmatpush1.bf16.msra.mxu0 %v502
    %632 = vmatprep.subr.bf16.mxu0 %v507
    %633 = vmatpush1.bf16.msra.mxu0 %v506
    %634 = vmatprep.subr.bf16.mxu0 %v511
    %635 = vmatpush1.bf16.msra.mxu0 %v510
    %636 = vmatprep.subr.bf16.mxu0 %v515
    %637 = vmatpush1.bf16.msra.mxu0 %v514
    %638 = vmatprep.subr.bf16.mxu0 %v519
    %639 = vmatpush1.bf16.msra.mxu0 %v518
    %640 = vmatprep.subr.bf16.mxu0 %v523
    %641 = vmatpush1.bf16.msra.mxu0 %v522
    %642 = vmatprep.subr.bf16.mxu0 %v527
    %643 = vmatpush1.bf16.msra.mxu0 %v526
    %644 = vmatprep.subr.bf16.mxu0 %v531
    %645 = vmatpush1.bf16.msra.mxu0 %v530
    %646 = vmatprep.subr.bf16.mxu0 %v535
    %647 = vmatpush1.bf16.msra.mxu0 %v534
    %648 = vmatprep.subr.bf16.mxu0 %v539
    %649 = vmatpush1.bf16.msra.mxu0 %v538
    %650 = vmatprep.subr.bf16.mxu0 %v543
    %651 = vmatpush1.bf16.msra.mxu0 %v542
    %652 = vmatprep.subr.bf16.mxu0 %v547
    %653 = vmatpush1.bf16.msra.mxu0 %v546
    %654 = vmatprep.subr.bf16.mxu0 %v551
    %655 = vmatpush1.bf16.msra.mxu0 %v550
    %656 = vmatprep.subr.bf16.mxu0 %v555
    %657 = vmatpush1.bf16.msra.mxu0 %v554
    %658 = vmatprep.subr.bf16.mxu0 %v559
    %659 = vmatpush1.bf16.msra.mxu0 %v558
    %660 = vmatprep.subr.bf16.mxu0 %v563
    %661 = vmatpush1.bf16.msra.mxu0 %v562
    %662 = vmatprep.mubr.bf16.mxu0 %v288
    %663 = vmatmul.mubr.bf16.gmra.mrb[0].mxu0 %v287
    %v664 = vpop.f32.mrb[0].mxu0
    %v665 = vadd.f32 %v293, %v664
    %v666 = vpop.f32.mrb[0].mxu0
    %v667 = vadd.f32 %v297, %v666
    %v668 = vpop.f32.mrb[0].mxu0
    %v669 = vpop.f32.mrb[0].mxu0
    %670 = vdwg.mxu0
    %671 = vmatprep.subr.bf16.mxu0 %v505
    %672 = vmatpush1.bf16.msra.mxu0 %v504
    %673 = vmatprep.subr.bf16.mxu0 %v509
    %674 = vmatpush1.bf16.msra.mxu0 %v508
    %675 = vmatprep.subr.bf16.mxu0 %v513
    %676 = vmatpush1.bf16.msra.mxu0 %v512
    %677 = vmatprep.subr.bf16.mxu0 %v517
    %678 = vmatpush1.bf16.msra.mxu0 %v516
    %679 = vmatprep.subr.bf16.mxu0 %v521
    %680 = vmatpush1.bf16.msra.mxu0 %v520
    %681 = vmatprep.subr.bf16.mxu0 %v525
    %682 = vmatpush1.bf16.msra.mxu0 %v524
    %683 = vmatprep.subr.bf16.mxu0 %v529
    %684 = vmatpush1.bf16.msra.mxu0 %v528
    %685 = vmatprep.subr.bf16.mxu0 %v533
    %686 = vmatpush1.bf16.msra.mxu0 %v532
    %687 = vmatprep.subr.bf16.mxu0 %v537
    %688 = vmatpush1.bf16.msra.mxu0 %v536
    %689 = vmatprep.subr.bf16.mxu0 %v541
    %690 = vmatpush1.bf16.msra.mxu0 %v540
    %691 = vmatprep.subr.bf16.mxu0 %v545
    %692 = vmatpush1.bf16.msra.mxu0 %v544
    %693 = vmatprep.subr.bf16.mxu0 %v549
    %694 = vmatpush1.bf16.msra.mxu0 %v548
    %695 = vmatprep.subr.bf16.mxu0 %v553
    %696 = vmatpush1.bf16.msra.mxu0 %v552
    %697 = vmatprep.subr.bf16.mxu0 %v557
    %698 = vmatpush1.bf16.msra.mxu0 %v556
    %699 = vmatprep.subr.bf16.mxu0 %v561
    %700 = vmatpush1.bf16.msra.mxu0 %v560
    %701 = vmatprep.subr.bf16.mxu0 %v565
    %702 = vmatpush1.bf16.msra.mxu0 %v564
    %703 = vmatprep.mubr.bf16.mxu0 %v288
    %704 = vmatmul.mubr.bf16.gmra.mrb[0].mxu0 %v287
    %v705 = vpop.f32.mrb[0].mxu0
    %v706 = vadd.f32 %v301, %v705
    %v707 = vpop.f32.mrb[0].mxu0
    %v708 = vadd.f32 %v305, %v707
    %v709 = vpop.f32.mrb[0].mxu0
    %v710 = vpop.f32.mrb[0].mxu0
    %711 = vdwg.mxu0
    %v712 = vxor.u32 %v665, 2147483648
    %v713 = vmul.f32 %v712, 1.442695
    %v714 = vpow.pop %v713
    %v715 = vadd.f32 %v714, 1.0
    %v716 = vrcp.pop %v715
    %v717 = vmul.f32 1.0, %v716
    %v718 = vxor.u32 %v667, 2147483648
    %v719 = vmul.f32 %v718, 1.442695
    %v720 = vpow.pop %v719
    %v721 = vadd.f32 %v720, 1.0
    %v722 = vrcp.pop %v721
    %v723 = vmul.f32 1.0, %v722
    %v724 = vmul.f32 %v717, %v708
    %v725 = vadd.f32 %v706, %v724
    %v726 = vtanh.pop %v725
    %v727 = vsub.f32 1.0, %v723
    %v728 = vmul.f32 %v727, %v726
    %v729 = vmul.f32 %v723, %v221
    %v730 = vadd.f32 %v728, %v729
    %731 = vst [vmem:[#allocation10] sm:$0xff] %v730
    // Predicated region
    $region54: #{tpu_custom_call.1} parent=1 // pred_check
      _
    $region55: #{tpu_custom_call.1} parent=1 // pred_check_branch
      %733 = sbr.rel (0) target = $region57
    $region56: #{tpu_custom_call.1} parent=1 // pred_region
      %s735 = ssub.s32 128, 128
      %736 = vsyncadd [#allocation4], %s735
      %s738 = sshll.u32 [#allocation10], 4
      %s739 = int_to_ptr.vmem [resolvable:$true] %s738
      %741 = dma.vmem_to_hbm [thread:$0]  %s739, 128, %s9, [#allocation4]
    $region57: #{tpu_custom_call.1} parent=1 // pred_fallthru
      _
    // Predicated region
    $region58: #{tpu_custom_call.1} parent=1 // pred_check
      _
    $region59: #{tpu_custom_call.1} parent=1 // pred_check_branch
      %743 = sbr.rel (0) target = $region61
    $region60: #{tpu_custom_call.1} parent=1 // pred_region
      %s745 = ssub.s32 128, 128
      %746 = vsyncadd [#allocation12], %s745
      %s748 = sshll.u32 [#allocation11], 4
      %s749 = int_to_ptr.vmem [resolvable:$true] %s748
      %751 = dma.vmem_to_hbm [thread:$0]  %s749, 128, %s10, [#allocation12]
    $region61: #{tpu_custom_call.1} parent=1 // pred_fallthru
      _
    // Predicated region
    $region62: #{tpu_custom_call.1} parent=1 // pred_check
      _
    $region63: #{tpu_custom_call.1} parent=1 // pred_check_branch
      %753 = sbr.rel (0) target = $region65
    $region64: #{tpu_custom_call.1} parent=1 // pred_region
      %754 = dma.done [#allocation4], 128
    $region65: #{tpu_custom_call.1} parent=1 // pred_fallthru
      _
    // Predicated region
    $region66: #{tpu_custom_call.1} parent=1 // pred_check
      _
    $region67: #{tpu_custom_call.1} parent=1 // pred_check_branch
      %756 = sbr.rel (0) target = $region69
    $region68: #{tpu_custom_call.1} parent=1 // pred_region
      %757 = dma.done [#allocation12], 128
    $region69: #{tpu_custom_call.1} parent=1 // pred_fallthru
      _
    %758 = vsyncpa [#allocation3], 1
    %759 = vsyncpa [#allocation6], 1
    %760 = vsyncpa [#allocation9], 1
    %761 = vsyncpa [#allocation4], 1
    %762 = vsyncpa [#allocation12], 1

</llo_original>
